<compile_context>
chip_gen: v7x
topology: tpu7x:2x2x1
jax: 0.10.0
libtpu: 0.0.40
codegen_flags: <defaults>
</compile_context>

<pallas_src>
import functools

import jax
import jax.numpy as jnp
import numpy as np
from jax.experimental import pallas as pl
from jax.experimental.pallas import tpu as pltpu

# Module configuration (matches InterpNetBase(__init__) defaults used here):
LATENT = 32                 # latent_size
OUT_CH = 1                  # out_channels (intensity_loss=False)
K = 4                       # knn neighbors (radius_search=False -> self.K = K)
USE_DIRS = True
PREDICT_TRANSLATION = False
GEO_SIZE = (3 if USE_DIRS else 0) + (0 if PREDICT_TRANSLATION else 3)   # 6
IN_SIZE = LATENT + GEO_SIZE                                             # 38


def _interp_mlp_kernel(xT_ref, occ_ref,
                       win_t_ref, bin_ref,
                       w1_t_ref, b1_ref, w2_t_ref, b2_ref,
                       wout_t_ref, bout_ref,
                       logits_ref, loss_ref,
                       *, total_edges):
    i = pl.program_id(0)
    tm = occ_ref.shape[-1]

    # x = self.fc_in(cat([latents, pos_rel, dirs]))  -- NT form: (L, Dp) @ (Dp, tm).
    h = jnp.dot(win_t_ref[...], xT_ref[...],
                preferred_element_type=jnp.float32) + bin_ref[...]
    # for l in self.mlp_layers: x = l(relu(x))  -- relu/bias on f32 (L, tm) acc,
    # bf16 only at MXU dot inputs.
    h = jnp.dot(w1_t_ref[...], jnp.maximum(h, 0.0).astype(jnp.bfloat16),
                preferred_element_type=jnp.float32) + b1_ref[...]
    h = jnp.dot(w2_t_ref[...], jnp.maximum(h, 0.0).astype(jnp.bfloat16),
                preferred_element_type=jnp.float32) + b2_ref[...]
    # x = self.fc_out(x) -- (C, L) @ (L, tm) -> lane-dense (C, tm) logits.
    z = jnp.dot(wout_t_ref[...], h.astype(jnp.bfloat16),
                preferred_element_type=jnp.float32) + bout_ref[...]
    logits_ref[...] = z.astype(logits_ref.dtype)

    # recons_loss = BCE_with_logits(x[:, 0], occupancies) -- stable form, lane-dense,
    # padded edge columns masked out; per-block partial sum, mean taken in wrapper.
    z0 = z[0:1, :]
    y = occ_ref[...]
    bce = jnp.maximum(z0, 0.0) - z0 * y + jnp.log1p(jnp.exp(-jnp.abs(z0)))
    lane = jax.lax.broadcasted_iota(jnp.int32, (1, tm), 1)
    valid = (i * tm + lane) < total_edges
    bce = jnp.where(valid, bce, 0.0)
    loss_ref[0] = jnp.sum(bce, keepdims=True)          # (1, 1) partial for this block


def _round_up(x, m):
    return ((x + m - 1) // m) * m


def interp_forward_pallas(latents, dirs, pos_source, pos_target, occupancies,
                          row, col, params, *, tm=8192):
    """Fused fc_in -> 2x(ReLU, Linear) -> fc_out -> BCE-with-logits(mean).

    latents (N_src, L), dirs (N_src, 3), pos_source (N_src, 3), pos_target (N_tgt, 3),
    occupancies (N_tgt,), row/col (E,) edge target/source indices from knn.
    Returns (logits [E, C] f32, recons_loss scalar f32)."""
    w_in, b_in, w1, b1, w2, b2, w_out, b_out = params
    E = int(row.shape[0])
    L = w_in.shape[1]
    C = w_out.shape[1]
    D_in = w_in.shape[0]
    D_pad = _round_up(D_in, 8)                         # 38 -> 40 (sublane aligned)

    # --- tile size: big to amortize the ~0.35us per-grid-step overhead, multiple of
    #     256, clamped to E, and G >= 2 whenever E allows it (both v7x TCs get work).
    e_al = _round_up(E, 256)
    tm = min(tm, e_al)
    if e_al >= 512:
        tm = min(tm, _round_up((e_al + 1) // 2, 256))
    tm = max(256, (tm // 256) * 256)
    G = pl.cdiv(E, tm)
    E_pad = G * tm
    pad = E_pad - E

    bf = jnp.bfloat16

    # --- cast at source size (pre-gather), gather bf16, build ONE packed feature-major
    #     slab x^T = [latents ; pos_rel ; dirs]^T  -> (D_pad, E_pad), edges on lanes.
    latT = latents.astype(bf).T                                     # (L, N_src)
    dirT = dirs.astype(bf).T                                        # (3, N_src)
    pos_rel_T = (pos_target[row] - pos_source[col]).T.astype(bf)    # (3, E)
    xT = jnp.concatenate([latT[:, col], pos_rel_T, dirT[:, col]], axis=0)   # (D_in, E)
    xT = jnp.pad(xT, ((0, D_pad - D_in), (0, pad)))                 # (D_pad, E_pad)

    occ_row = jnp.pad(occupancies.astype(jnp.float32)[row], (0, pad)).reshape(1, E_pad)

    # Weights in NT form (h^T = W^T-form @ x^T); biases as columns (broadcast on lanes).
    win_t = jnp.pad(w_in.T, ((0, 0), (0, D_pad - D_in))).astype(bf)   # (L, D_pad)
    w1_t = w1.T.astype(bf)                                            # (L, L)
    w2_t = w2.T.astype(bf)                                            # (L, L)
    wout_t = w_out.T.astype(bf)                                       # (C, L)
    bin_c = b_in.reshape(L, 1).astype(jnp.float32)
    b1_c = b1.reshape(L, 1).astype(jnp.float32)
    b2_c = b2.reshape(L, 1).astype(jnp.float32)
    bout_c = b_out.reshape(C, 1).astype(jnp.float32)

    full2 = lambda i: (0, 0)
    kernel = functools.partial(_interp_mlp_kernel, total_edges=E)

    logits2d, loss_parts = pl.pallas_call(
        kernel,
        out_shape=(jax.ShapeDtypeStruct((C, E_pad), jnp.float32),
                   jax.ShapeDtypeStruct((G, 1, 1), jnp.float32)),
        grid_spec=pltpu.PrefetchScalarGridSpec(
            num_scalar_prefetch=0,
            grid=(G,),
            in_specs=[
                pl.BlockSpec((D_pad, tm), lambda i: (0, i)),   # packed features (bf16)
                pl.BlockSpec((1, tm), lambda i: (0, i)),       # occupancies[row], lane-dense
                pl.BlockSpec((L, D_pad), full2),               # fc_in.weight (NT)
                pl.BlockSpec((L, 1), full2),                   # fc_in.bias
                pl.BlockSpec((L, L), full2),                   # mlp_layers[0].weight (NT)
                pl.BlockSpec((L, 1), full2),
                pl.BlockSpec((L, L), full2),                   # mlp_layers[1].weight (NT)
                pl.BlockSpec((L, 1), full2),
                pl.BlockSpec((C, L), full2),                   # fc_out.weight (NT)
                pl.BlockSpec((C, 1), full2),                   # fc_out.bias
            ],
            out_specs=[
                pl.BlockSpec((C, tm), lambda i: (0, i)),       # logits, lane-dense
                pl.BlockSpec((1, 1, 1), lambda i: (i, 0, 0)),  # per-block partial BCE sum
            ],
        ),
        # Per-block outputs only -> no cross-step dependence -> safe to shard over
        # both TensorCores on v7x; harmless on v5e/v6e.
        compiler_params=pltpu.CompilerParams(dimension_semantics=("parallel",)),
    )(xT, occ_row, win_t, bin_c, w1_t, b1_c, w2_t, b2_c, wout_t, bout_c)

    logits = logits2d[:, :E].T                         # (E, C), matches PyTorch x
    recons_loss = jnp.sum(loss_parts) / jnp.float32(E)
    return logits, recons_loss


def batched_knn(pos_source, pos_target, batch_source, batch_target, k):
    """Plain-JAX equivalent of torch_cluster.knn(pos_source, pos_target, k, ...)."""
    d2 = jnp.sum((pos_target[:, None, :] - pos_source[None, :, :]) ** 2, axis=-1)
    same_batch = batch_target[:, None] == batch_source[None, :]
    d2 = jnp.where(same_batch, d2, jnp.inf)
    _, col = jax.lax.top_k(-d2, k)                        # [Nt, k]
    row = jnp.repeat(jnp.arange(pos_target.shape[0]), k)  # [Nt * k]
    return row, col.reshape(-1)


def _linear_params(key, fan_in, fan_out):
    # Deterministic init matching torch.nn.Linear default: U(-1/sqrt(fan_in), +)
    kw, kb = jax.random.split(key)
    bound = 1.0 / float(np.sqrt(fan_in))
    w = jax.random.uniform(kw, (fan_in, fan_out), jnp.float32, -bound, bound)
    b = jax.random.uniform(kb, (1, fan_out), jnp.float32, -bound, bound)
    return w, b


if __name__ == "__main__":
    key = jax.random.PRNGKey(0)
    keys = jax.random.split(key, 10)

    # Synthetic "data" dict contents (batch column already stripped from pos/dirs):
    N_src, N_tgt = 48, 64
    batch_source = jnp.concatenate([jnp.zeros(N_src // 2, jnp.int32),
                                    jnp.ones(N_src - N_src // 2, jnp.int32)])
    batch_target = jnp.concatenate([jnp.zeros(N_tgt // 2, jnp.int32),
                                    jnp.ones(N_tgt - N_tgt // 2, jnp.int32)])
    pos_source = jax.random.uniform(keys[0], (N_src, 3), jnp.float32)   # data['pos'][:, 1:]
    pos_target = jax.random.uniform(keys[1], (N_tgt, 3), jnp.float32)   # data['pos_non_manifold'][:, 1:]
    latents = jax.random.normal(keys[2], (N_src, LATENT), jnp.float32) * 0.5
    dirs = jax.random.normal(keys[3], (N_src, 3), jnp.float32)          # data['dirs'][:, 1:]
    dirs = dirs / jnp.linalg.norm(dirs, axis=1, keepdims=True)
    occupancies = (jax.random.uniform(keys[4], (N_tgt,)) > 0.5).astype(jnp.float32)

    # Parameters (fc_in, 2x mlp_layers, fc_out), deterministic in-script init.
    w_in, b_in = _linear_params(keys[5], IN_SIZE, LATENT)
    w1, b1 = _linear_params(keys[6], LATENT, LATENT)
    w2, b2 = _linear_params(keys[7], LATENT, LATENT)
    w_out, b_out = _linear_params(keys[8], LATENT, OUT_CH)
    params = (w_in, b_in, w1, b1, w2, b2, w_out, b_out)

    # Neighbor search: irregular indexing, stays as JAX glue.
    row, col = batched_knn(pos_source, pos_target, batch_source, batch_target, K)
    # TODO(synk): inference_mode branch (avg_pool_x scatter-mean + torch.unique fill of
    # per-target predictions) is data-dependent scatter; not translated here (training path only).

    logits, recons_loss = interp_forward_pallas(
        latents, dirs, pos_source, pos_target, occupancies, row, col, params)
    predictions = logits[:, 0]            # return_data['predictions']
    jax.block_until_ready((predictions, recons_loss))

    # Pure-JAX reference of the hot path (same bf16-input / f32-accumulate math).
    bf = jnp.bfloat16

    def _mm(a, w):
        return jnp.dot(a.astype(bf), w.astype(bf), preferred_element_type=jnp.float32)

    pos_relative = pos_target[row] - pos_source[col]
    lat_e = latents[col]
    geo_e = jnp.concatenate([pos_relative, dirs[col]], 1)
    occ_e = occupancies[row]
    x_ref = jnp.concatenate([lat_e, geo_e], 1)                # cat([latents, pos_rel, dirs])
    h = _mm(x_ref, w_in) + b_in
    h = _mm(jnp.maximum(h, 0.0), w1) + b1
    h = _mm(jnp.maximum(h, 0.0), w2) + b2
    z_ref = _mm(h, w_out) + b_out                             # [E, 1]
    z0 = z_ref[:, 0]
    loss_ref = jnp.mean(jnp.maximum(z0, 0.0) - z0 * occ_e
                        + jnp.log1p(jnp.exp(-jnp.abs(z0))))

    assert np.allclose(np.asarray(logits), np.asarray(z_ref), atol=2e-2, rtol=2e-2)
    assert abs(float(recons_loss) - float(loss_ref)) < 2e-3

    print("KERNEL_OK")
</pallas_src>

<mosaic_0001>
module attributes {stable_mosaic.version = 11 : i64} {
  func.func @_interp_mlp_kernel(%arg0: i32, %arg1: memref<40x256xbf16, #tpu.memory_space<vmem>>, %arg2: memref<1x256xf32, #tpu.memory_space<vmem>>, %arg3: memref<32x40xbf16, #tpu.memory_space<vmem>>, %arg4: memref<32x1xf32, #tpu.memory_space<vmem>>, %arg5: memref<32x32xbf16, #tpu.memory_space<vmem>>, %arg6: memref<32x1xf32, #tpu.memory_space<vmem>>, %arg7: memref<32x32xbf16, #tpu.memory_space<vmem>>, %arg8: memref<32x1xf32, #tpu.memory_space<vmem>>, %arg9: memref<1x32xbf16, #tpu.memory_space<vmem>>, %arg10: memref<1x1xf32, #tpu.memory_space<vmem>>, %arg11: memref<1x256xf32, #tpu.memory_space<vmem>>, %arg12: memref<1x1x1xf32, #tpu.memory_space<vmem>>) attributes {dimension_semantics = [#tpu.dimension_semantics<parallel>], iteration_bounds = array<i64: 1>, scalar_prefetch = 0 : i64, scratch_operands = 0 : i64, tpu.core_type = #tpu.core_type<tc>, window_params = [{transform_indices = @transform_0, window_bounds = array<i64: 40, 256>}, {transform_indices = @transform_1, window_bounds = array<i64: 1, 256>}, {pipeline_mode = #tpu.pipeline_mode<synchronous>, transform_indices = @transform_2, window_bounds = array<i64: 32, 40>}, {pipeline_mode = #tpu.pipeline_mode<synchronous>, transform_indices = @transform_3, window_bounds = array<i64: 32, 1>}, {pipeline_mode = #tpu.pipeline_mode<synchronous>, transform_indices = @transform_4, window_bounds = array<i64: 32, 32>}, {pipeline_mode = #tpu.pipeline_mode<synchronous>, transform_indices = @transform_5, window_bounds = array<i64: 32, 1>}, {pipeline_mode = #tpu.pipeline_mode<synchronous>, transform_indices = @transform_6, window_bounds = array<i64: 32, 32>}, {pipeline_mode = #tpu.pipeline_mode<synchronous>, transform_indices = @transform_7, window_bounds = array<i64: 32, 1>}, {pipeline_mode = #tpu.pipeline_mode<synchronous>, transform_indices = @transform_8, window_bounds = array<i64: 1, 32>}, {pipeline_mode = #tpu.pipeline_mode<synchronous>, transform_indices = @transform_9, window_bounds = array<i64: 1, 1>}, {transform_indices = @transform_10, window_bounds = array<i64: 1, 256>}, {transform_indices = @transform_11, window_bounds = array<i64: 1, 1, 1>}]} {
    %c0 = arith.constant 0 : index
    %c0_0 = arith.constant 0 : index
    %0 = vector.load %arg3[%c0, %c0_0] : memref<32x40xbf16, #tpu.memory_space<vmem>>, vector<32x40xbf16>
    %c0_1 = arith.constant 0 : index
    %c0_2 = arith.constant 0 : index
    %1 = vector.load %arg1[%c0_1, %c0_2] : memref<40x256xbf16, #tpu.memory_space<vmem>>, vector<40x256xbf16>
    %cst = arith.constant dense<0.000000e+00> : vector<32x256xf32>
    %2 = tpu.matmul %0, %1, %cst {dimension_numbers = #tpu.dot_dimension_numbers<[1], [0], [0], [1], [0, 0, 1, 1], [], []>} : vector<32x40xbf16>, vector<40x256xbf16>, vector<32x256xf32> -> vector<32x256xf32>
    %c0_3 = arith.constant 0 : index
    %c0_4 = arith.constant 0 : index
    %3 = vector.load %arg4[%c0_3, %c0_4] : memref<32x1xf32, #tpu.memory_space<vmem>>, vector<32x1xf32>
    %4 = vector.broadcast %3 : vector<32x1xf32> to vector<32x256xf32>
    %5 = arith.addf %2, %4 : vector<32x256xf32>
    %c0_5 = arith.constant 0 : index
    %c0_6 = arith.constant 0 : index
    %6 = vector.load %arg5[%c0_5, %c0_6] : memref<32x32xbf16, #tpu.memory_space<vmem>>, vector<32x32xbf16>
    %cst_7 = arith.constant 0.000000e+00 : f32
    %7 = vector.broadcast %cst_7 : f32 to vector<32x256xf32>
    %8 = arith.maximumf %5, %7 : vector<32x256xf32>
    %9 = arith.truncf %8 : vector<32x256xf32> to vector<32x256xbf16>
    %cst_8 = arith.constant dense<0.000000e+00> : vector<32x256xf32>
    %10 = tpu.matmul %6, %9, %cst_8 {dimension_numbers = #tpu.dot_dimension_numbers<[1], [0], [0], [1], [0, 0, 1, 1], [], []>} : vector<32x32xbf16>, vector<32x256xbf16>, vector<32x256xf32> -> vector<32x256xf32>
    %c0_9 = arith.constant 0 : index
    %c0_10 = arith.constant 0 : index
    %11 = vector.load %arg6[%c0_9, %c0_10] : memref<32x1xf32, #tpu.memory_space<vmem>>, vector<32x1xf32>
    %12 = vector.broadcast %11 : vector<32x1xf32> to vector<32x256xf32>
    %13 = arith.addf %10, %12 : vector<32x256xf32>
    %c0_11 = arith.constant 0 : index
    %c0_12 = arith.constant 0 : index
    %14 = vector.load %arg7[%c0_11, %c0_12] : memref<32x32xbf16, #tpu.memory_space<vmem>>, vector<32x32xbf16>
    %cst_13 = arith.constant 0.000000e+00 : f32
    %15 = vector.broadcast %cst_13 : f32 to vector<32x256xf32>
    %16 = arith.maximumf %13, %15 : vector<32x256xf32>
    %17 = arith.truncf %16 : vector<32x256xf32> to vector<32x256xbf16>
    %cst_14 = arith.constant dense<0.000000e+00> : vector<32x256xf32>
    %18 = tpu.matmul %14, %17, %cst_14 {dimension_numbers = #tpu.dot_dimension_numbers<[1], [0], [0], [1], [0, 0, 1, 1], [], []>} : vector<32x32xbf16>, vector<32x256xbf16>, vector<32x256xf32> -> vector<32x256xf32>
    %c0_15 = arith.constant 0 : index
    %c0_16 = arith.constant 0 : index
    %19 = vector.load %arg8[%c0_15, %c0_16] : memref<32x1xf32, #tpu.memory_space<vmem>>, vector<32x1xf32>
    %20 = vector.broadcast %19 : vector<32x1xf32> to vector<32x256xf32>
    %21 = arith.addf %18, %20 : vector<32x256xf32>
    %c0_17 = arith.constant 0 : index
    %c0_18 = arith.constant 0 : index
    %22 = vector.load %arg9[%c0_17, %c0_18] : memref<1x32xbf16, #tpu.memory_space<vmem>>, vector<1x32xbf16>
    %23 = arith.truncf %21 : vector<32x256xf32> to vector<32x256xbf16>
    %cst_19 = arith.constant dense<0.000000e+00> : vector<1x256xf32>
    %24 = tpu.matmul %22, %23, %cst_19 {dimension_numbers = #tpu.dot_dimension_numbers<[1], [0], [0], [1], [0, 0, 1, 1], [], []>} : vector<1x32xbf16>, vector<32x256xbf16>, vector<1x256xf32> -> vector<1x256xf32>
    %c0_20 = arith.constant 0 : index
    %c0_21 = arith.constant 0 : index
    %25 = vector.load %arg10[%c0_20, %c0_21] : memref<1x1xf32, #tpu.memory_space<vmem>>, vector<1x1xf32>
    %26 = vector.broadcast %25 : vector<1x1xf32> to vector<1x256xf32>
    %27 = arith.addf %24, %26 : vector<1x256xf32>
    %c0_22 = arith.constant 0 : index
    %c0_23 = arith.constant 0 : index
    %28 = vector.load %arg11[%c0_22, %c0_23] : memref<1x256xf32, #tpu.memory_space<vmem>>, vector<1x256xf32>
    tpu.vector_store %arg11[%c0_22, %c0_23], %27 {strides = array<i32>} : memref<1x256xf32, #tpu.memory_space<vmem>>, vector<1x256xf32>,
    %c0_24 = arith.constant 0 : index
    %c0_25 = arith.constant 0 : index
    %29 = vector.load %arg2[%c0_24, %c0_25] : memref<1x256xf32, #tpu.memory_space<vmem>>, vector<1x256xf32>
    %cst_26 = arith.constant 0.000000e+00 : f32
    %30 = vector.broadcast %cst_26 : f32 to vector<1x256xf32>
    %31 = arith.maximumf %27, %30 : vector<1x256xf32>
    %32 = arith.mulf %27, %29 : vector<1x256xf32>
    %33 = arith.subf %31, %32 : vector<1x256xf32>
    %34 = math.absf %27 : vector<1x256xf32>
    %cst_27 = arith.constant 0.000000e+00 : f32
    %35 = vector.broadcast %cst_27 : f32 to vector<1x256xf32>
    %36 = arith.subf %35, %34 : vector<1x256xf32>
    %37 = math.exp %36 : vector<1x256xf32>
    %38 = math.log1p %37 : vector<1x256xf32>
    %39 = arith.addf %33, %38 : vector<1x256xf32>
    %40 = tpu.iota {dimensions = array<i32: 1>} : vector<1x256xi32>
    %c256_i32 = arith.constant 256 : i32
    %41 = arith.muli %arg0, %c256_i32 : i32
    %42 = vector.broadcast %41 : i32 to vector<1x256xi32>
    %43 = arith.addi %42, %40 : vector<1x256xi32>
    %c256_i32_28 = arith.constant 256 : i32
    %44 = vector.broadcast %c256_i32_28 : i32 to vector<1x256xi32>
    %45 = arith.cmpi slt, %43, %44 : vector<1x256xi32>
    %cst_29 = arith.constant 0.000000e+00 : f32
    %46 = vector.broadcast %cst_29 : f32 to vector<1x256xf32>
    %47 = arith.select %45, %39, %46 : vector<1x256xi1>, vector<1x256xf32>
    %48 = vector.shape_cast %47 : vector<1x256xf32> to vector<1x1x256xf32>
    %cst_30 = arith.constant dense<0.000000e+00> : vector<1xf32>
    %49 = vector.multi_reduction <add>, %48, %cst_30 [1, 2] : vector<1x1x256xf32> to vector<1xf32>
    %50 = vector.shape_cast %49 : vector<1xf32> to vector<1x1x1xf32>
    %51 = vector.extract %50[0, 0, 0] : f32 from vector<1x1x1xf32>
    %52 = vector.broadcast %51 : f32 to vector<1x1xf32>
    %c0_31 = arith.constant 0 : index
    %c0_32 = arith.constant 0 : index
    %c0_33 = arith.constant 0 : index
    %53 = vector.load %arg12[%c0_31, %c0_32, %c0_33] : memref<1x1x1xf32, #tpu.memory_space<vmem>>, vector<1x1x1xf32>
    %54 = vector.shape_cast %53 : vector<1x1x1xf32> to vector<1x1xf32>
    %55 = vector.shape_cast %52 : vector<1x1xf32> to vector<1x1x1xf32>
    tpu.vector_store %arg12[%c0_31, %c0_32, %c0_33], %55 {strides = array<i32>} : memref<1x1x1xf32, #tpu.memory_space<vmem>>, vector<1x1x1xf32>,
    return
  }
  func.func @transform_0(%arg0: i32) -> (i32, i32) {
    %c0_i32 = arith.constant 0 : i32
    %c0_i32_0 = arith.constant 0 : i32
    return %c0_i32, %arg0 : i32, i32
  }
  func.func @transform_1(%arg0: i32) -> (i32, i32) {
    %c0_i32 = arith.constant 0 : i32
    %c0_i32_0 = arith.constant 0 : i32
    return %c0_i32, %arg0 : i32, i32
  }
  func.func @transform_2(%arg0: i32) -> (i32, i32) {
    %c0_i32 = arith.constant 0 : i32
    %c0_i32_0 = arith.constant 0 : i32
    %c0_i32_1 = arith.constant 0 : i32
    return %c0_i32, %c0_i32_0 : i32, i32
  }
  func.func @transform_3(%arg0: i32) -> (i32, i32) {
    %c0_i32 = arith.constant 0 : i32
    %c0_i32_0 = arith.constant 0 : i32
    %c0_i32_1 = arith.constant 0 : i32
    return %c0_i32, %c0_i32_0 : i32, i32
  }
  func.func @transform_4(%arg0: i32) -> (i32, i32) {
    %c0_i32 = arith.constant 0 : i32
    %c0_i32_0 = arith.constant 0 : i32
    %c0_i32_1 = arith.constant 0 : i32
    return %c0_i32, %c0_i32_0 : i32, i32
  }
  func.func @transform_5(%arg0: i32) -> (i32, i32) {
    %c0_i32 = arith.constant 0 : i32
    %c0_i32_0 = arith.constant 0 : i32
    %c0_i32_1 = arith.constant 0 : i32
    return %c0_i32, %c0_i32_0 : i32, i32
  }
  func.func @transform_6(%arg0: i32) -> (i32, i32) {
    %c0_i32 = arith.constant 0 : i32
    %c0_i32_0 = arith.constant 0 : i32
    %c0_i32_1 = arith.constant 0 : i32
    return %c0_i32, %c0_i32_0 : i32, i32
  }
  func.func @transform_7(%arg0: i32) -> (i32, i32) {
    %c0_i32 = arith.constant 0 : i32
    %c0_i32_0 = arith.constant 0 : i32
    %c0_i32_1 = arith.constant 0 : i32
    return %c0_i32, %c0_i32_0 : i32, i32
  }
  func.func @transform_8(%arg0: i32) -> (i32, i32) {
    %c0_i32 = arith.constant 0 : i32
    %c0_i32_0 = arith.constant 0 : i32
    %c0_i32_1 = arith.constant 0 : i32
    return %c0_i32, %c0_i32_0 : i32, i32
  }
  func.func @transform_9(%arg0: i32) -> (i32, i32) {
    %c0_i32 = arith.constant 0 : i32
    %c0_i32_0 = arith.constant 0 : i32
    %c0_i32_1 = arith.constant 0 : i32
    return %c0_i32, %c0_i32_0 : i32, i32
  }
  func.func @transform_10(%arg0: i32) -> (i32, i32) {
    %c0_i32 = arith.constant 0 : i32
    %c0_i32_0 = arith.constant 0 : i32
    return %c0_i32, %arg0 : i32, i32
  }
  func.func @transform_11(%arg0: i32) -> (i32, i32, i32) {
    %c0_i32 = arith.constant 0 : i32
    %c0_i32_0 = arith.constant 0 : i32
    %c0_i32_1 = arith.constant 0 : i32
    return %arg0, %c0_i32, %c0_i32_0 : i32, i32, i32
  }
}

</mosaic_0001>

<llo_original>
// kernel: tpu_custom_call.1
$region0: #{tpu_custom_call.1}
  #allocation0 [shape = 'u32[]', space=smem, size = 0x4, offset = 0x4, fixed_abs, tag = 'smem constant byte address 0x4 - core index']
  #allocation1 [shape = 'u32[144,128]{1,0:T(1,128)}', space=vmem, size = 0x12000, scoped, tag = 'internal scratch']
  #allocation2 [shape = 'f32[1,1]{1,0:T(1,128)S(1)}', space=vmem, size = 0x200, scoped, tag = 'scoped memory for tpu_custom_call.1']
  %s0 = inlined_call_operand.vmem [shape: bf16[40,256], index: 0, kind: input, shape index: {}]
  %s1 = inlined_call_operand.vmem [shape: f32[1,256], index: 1, kind: input, shape index: {}]
  %s2 = inlined_call_operand.vmem [shape: bf16[32,40], index: 2, kind: input, shape index: {}]
  %s3 = inlined_call_operand.vmem [shape: f32[32,1], index: 3, kind: input, shape index: {}]
  %s4 = inlined_call_operand.vmem [shape: bf16[32,32], index: 4, kind: input, shape index: {}]
  %s5 = inlined_call_operand.vmem [shape: f32[32,1], index: 5, kind: input, shape index: {}]
  %s6 = inlined_call_operand.vmem [shape: bf16[32,32], index: 6, kind: input, shape index: {}]
  %s7 = inlined_call_operand.vmem [shape: f32[32,1], index: 7, kind: input, shape index: {}]
  %s8 = inlined_call_operand.vmem [shape: bf16[1,32], index: 8, kind: input, shape index: {}]
  %s9 = inlined_call_operand.<no memory space> [shape: f32[1,1], index: 9, kind: input, shape index: {}]
  %s10 = inlined_call_operand.hbm [shape: f32[1,256], index: 10, kind: output, shape index: {0}]
  %s11 = inlined_call_operand.hbm [shape: f32[1,1,1], index: 11, kind: output, shape index: {1}]
  %12 = xla_tuple %s10, %s11
  %s13 = sld [smem:[#allocation0]]
  $region58: #{tpu_custom_call.1} parent=0
    _
  %s15 = ssub.s32 1, %s13
  %s16 = scalar_select 0, %s15, %s13
  %v17 = vstv %s9
  %18 = vst [vmem:[#allocation2] sm:$0x1] %v17
  $region1: #{tpu_custom_call.1} parent=0
    #allocation3 [shape = 'u8[1024]{0}', space=vmem, size = 0x400, scoped, tag = 'output window, operand 0, single buffered']
    #allocation4 [shape = 's32[1]{0}', space=sflag, size = 0x4, scoped, tag = 'scoped memory for tpu_custom_call.1']
    #allocation5 [shape = 'u8[512]{0}', space=vmem, size = 0x400, scoped, tag = 'output window, operand 1, single buffered']
    #allocation6 [shape = 's32[1]{0}', space=sflag, size = 0x4, scoped, tag = 'scoped memory for tpu_custom_call.1']
    %19 = vsyncpa [#allocation4], 0
    %20 = vsyncpa [#allocation6], 0
    // Predicated region
    $region2: #{tpu_custom_call.1} parent=1 // pred_check
      _
    $region3: #{tpu_custom_call.1} parent=1 // pred_check_branch
      %22 = sbr.rel (0) target = $region5
    $region4: #{tpu_custom_call.1} parent=1 // pred_region
      _
    $region5: #{tpu_custom_call.1} parent=1 // pred_fallthru
      _
    // Predicated region
    $region6: #{tpu_custom_call.1} parent=1 // pred_check
      _
    $region7: #{tpu_custom_call.1} parent=1 // pred_check_branch
      %24 = sbr.rel (0) target = $region9
    $region8: #{tpu_custom_call.1} parent=1 // pred_region
      _
    $region9: #{tpu_custom_call.1} parent=1 // pred_fallthru
      _
    // Predicated region
    $region10: #{tpu_custom_call.1} parent=1 // pred_check
      _
    $region11: #{tpu_custom_call.1} parent=1 // pred_check_branch
      %26 = sbr.rel (0) target = $region13
    $region12: #{tpu_custom_call.1} parent=1 // pred_region
      _
    $region13: #{tpu_custom_call.1} parent=1 // pred_fallthru
      _
    // Predicated region
    $region14: #{tpu_custom_call.1} parent=1 // pred_check
      _
    $region15: #{tpu_custom_call.1} parent=1 // pred_check_branch
      %28 = sbr.rel (0) target = $region17
    $region16: #{tpu_custom_call.1} parent=1 // pred_region
      _
    $region17: #{tpu_custom_call.1} parent=1 // pred_fallthru
      _
    // Predicated region
    $region18: #{tpu_custom_call.1} parent=1 // pred_check
      _
    $region19: #{tpu_custom_call.1} parent=1 // pred_check_branch
      %30 = sbr.rel (0) target = $region21
    $region20: #{tpu_custom_call.1} parent=1 // pred_region
      _
    $region21: #{tpu_custom_call.1} parent=1 // pred_fallthru
      _
    // Predicated region
    $region22: #{tpu_custom_call.1} parent=1 // pred_check
      _
    $region23: #{tpu_custom_call.1} parent=1 // pred_check_branch
      %32 = sbr.rel (0) target = $region25
    $region24: #{tpu_custom_call.1} parent=1 // pred_region
      _
    $region25: #{tpu_custom_call.1} parent=1 // pred_fallthru
      _
    // Predicated region
    $region26: #{tpu_custom_call.1} parent=1 // pred_check
      _
    $region27: #{tpu_custom_call.1} parent=1 // pred_check_branch
      %34 = sbr.rel (0) target = $region29
    $region28: #{tpu_custom_call.1} parent=1 // pred_region
      _
    $region29: #{tpu_custom_call.1} parent=1 // pred_fallthru
      _
    // Predicated region
    $region30: #{tpu_custom_call.1} parent=1 // pred_check
      _
    $region31: #{tpu_custom_call.1} parent=1 // pred_check_branch
      %36 = sbr.rel (0) target = $region33
    $region32: #{tpu_custom_call.1} parent=1 // pred_region
      _
    $region33: #{tpu_custom_call.1} parent=1 // pred_fallthru
      _
    // Predicated region
    $region34: #{tpu_custom_call.1} parent=1 // pred_check
      _
    $region35: #{tpu_custom_call.1} parent=1 // pred_check_branch
      %38 = sbr.rel (0) target = $region37
    $region36: #{tpu_custom_call.1} parent=1 // pred_region
      _
    $region37: #{tpu_custom_call.1} parent=1 // pred_fallthru
      _
    // Predicated region
    $region38: #{tpu_custom_call.1} parent=1 // pred_check
      _
    $region39: #{tpu_custom_call.1} parent=1 // pred_check_branch
      %40 = sbr.rel (0) target = $region41
    $region40: #{tpu_custom_call.1} parent=1 // pred_region
      _
    $region41: #{tpu_custom_call.1} parent=1 // pred_fallthru
      _
    %v42 = vld [vmem:[%s2] sm:$0xf]
    %v43 = vld [vmem:[%s2 + $0x4] sm:$0xf]
    %v44 = vld [vmem:[%s2 + $0x8] sm:$0xf]
    %v45 = vld [vmem:[%s2 + $0xc] sm:$0xf]
    %v46 = vld [vmem:[%s0] sm:$0xff]
    %v47 = vld [vmem:[%s0 + $0x8] sm:$0xff]
    %v48 = vld [vmem:[%s0 + $0x10] sm:$0xff]
    %v49 = vld [vmem:[%s0 + $0x18] sm:$0xff]
    %v50 = vld [vmem:[%s0 + $0x20] sm:$0xff]
    %v51 = vld [vmem:[%s3] sm:$0xff]
    %v52 = vld [vmem:[%s3 + $0x8] sm:$0xff]
    %v53 = vld [vmem:[%s3 + $0x10] sm:$0xff]
    %v54 = vld [vmem:[%s3 + $0x18] sm:$0xff]
    %56 = vset.pattern.permute.xlu0 0
    %57 = vperm.xlu0 %56, %v51
    %v58 = vpop.permute.xlu0 %57
    %61 = vset.pattern.permute.xlu0 0
    %62 = vperm.xlu0 %61, %v52
    %v63 = vpop.permute.xlu0 %62
    %66 = vset.pattern.permute.xlu0 0
    %67 = vperm.xlu0 %66, %v53
    %v68 = vpop.permute.xlu0 %67
    %71 = vset.pattern.permute.xlu0 0
    %72 = vperm.xlu0 %71, %v54
    %v73 = vpop.permute.xlu0 %72
    %v79 = vunpack.c.l.b16 %v42
    %v80 = vunpack.c.l.b16 %v43
    %v81 = vunpack.c.l.b16 %v44
    %v82 = vunpack.c.l.b16 %v45
    %v83 = vpack.c.b16 %v80, %v79
    %v84 = vpack.c.b16 %v82, %v81
    %v90 = vunpack.c.l.b16 %v46
    %v91 = vunpack.c.h.b16 %v46
    %v92 = vunpack.c.l.b16 %v47
    %v93 = vunpack.c.h.b16 %v47
    %v94 = vunpack.c.l.b16 %v48
    %v95 = vunpack.c.h.b16 %v48
    %v96 = vunpack.c.l.b16 %v49
    %v97 = vunpack.c.h.b16 %v49
    %v98 = vunpack.c.l.b16 %v50
    %v99 = vunpack.c.h.b16 %v50
    %v100 = vpack.c.b16 %v92, %v90
    %v101 = vpack.c.b16 %v93, %v91
    %v102 = vpack.c.b16 %v96, %v94
    %v103 = vpack.c.b16 %v97, %v95
    %v104 = vpack.c.b16 %v98, %v98
    %v105 = vpack.c.b16 %v99, %v99
    %vm110 = vcmask 326656
    %v112 = vsel %vm110, %v83, 0
    %v115 = vsel %vm110, %v84, 0
    %vm117 = vcmask 1043456
    %v119 = vsel %vm117, %v104, 0
    %v122 = vsel %vm117, %v105, 0
    %124 = vmatprep.subr.bf16.mxu0 %v101
    %125 = vmatpush1.bf16.msra.mxu0 %v100
    %126 = vmatprep.subr.bf16.mxu0 %v103
    %127 = vmatpush1.bf16.msra.mxu0 %v102
    %128 = vmatprep.subr.bf16.mxu0 %v122
    %129 = vmatpush1.bf16.msra.mxu0 %v119
    %130 = vmatprep.subr.bf16.mxu0 0
    %131 = vmatpush1.bf16.msra.mxu0 0
    %132 = vmatprep.subr.bf16.mxu0 0
    %133 = vmatpush1.bf16.msra.mxu0 0
    %134 = vmatprep.subr.bf16.mxu0 0
    %135 = vmatpush1.bf16.msra.mxu0 0
    %136 = vmatprep.subr.bf16.mxu0 0
    %137 = vmatpush1.bf16.msra.mxu0 0
    %138 = vmatprep.subr.bf16.mxu0 0
    %139 = vmatpush1.bf16.msra.mxu0 0
    %140 = vmatprep.subr.bf16.mxu0 0
    %141 = vmatpush1.bf16.msra.mxu0 0
    %142 = vmatprep.subr.bf16.mxu0 0
    %143 = vmatpush1.bf16.msra.mxu0 0
    %144 = vmatprep.subr.bf16.mxu0 0
    %145 = vmatpush1.bf16.msra.mxu0 0
    %146 = vmatprep.subr.bf16.mxu0 0
    %147 = vmatpush1.bf16.msra.mxu0 0
    %148 = vmatprep.subr.bf16.mxu0 0
    %149 = vmatpush1.bf16.msra.mxu0 0
    %150 = vmatprep.subr.bf16.mxu0 0
    %151 = vmatpush1.bf16.msra.mxu0 0
    %152 = vmatprep.subr.bf16.mxu0 0
    %153 = vmatpush1.bf16.msra.mxu0 0
    %154 = vmatprep.subr.bf16.mxu0 0
    %155 = vmatpush1.bf16.msra.mxu0 0
    %156 = vmatprep.mubr.bf16.mxu0 0
    %157 = vmatmul.mubr.bf16.gmra.mrb[0].mxu0 %v112
    %v158 = vpop.f32.mrb[0].mxu0
    %v159 = vadd.f32 %v58, %v158
    %v160 = vpop.f32.mrb[0].mxu0
    %v161 = vadd.f32 %v58, %v160
    %v162 = vpop.f32.mrb[0].mxu0
    %v163 = vadd.f32 %v63, %v162
    %v164 = vpop.f32.mrb[0].mxu0
    %v165 = vadd.f32 %v63, %v164
    %166 = vmatprep.mubr.bf16.mxu0 0
    %167 = vmatmul.mubr.bf16.gmra.mrb[0].mxu0 %v115
    %v168 = vpop.f32.mrb[0].mxu0
    %v169 = vadd.f32 %v68, %v168
    %v170 = vpop.f32.mrb[0].mxu0
    %v171 = vadd.f32 %v68, %v170
    %v172 = vpop.f32.mrb[0].mxu0
    %v173 = vadd.f32 %v73, %v172
    %v174 = vpop.f32.mrb[0].mxu0
    %v175 = vadd.f32 %v73, %v174
    %176 = vdwg.mxu0
    %v177 = vld [vmem:[%s4] sm:$0xf]
    %v178 = vld [vmem:[%s4 + $0x4] sm:$0xf]
    %v179 = vld [vmem:[%s4 + $0x8] sm:$0xf]
    %v180 = vld [vmem:[%s4 + $0xc] sm:$0xf]
    %v181 = vmax.f32 %v159, 0.0
    %v182 = vmax.f32 %v161, 0.0
    %v183 = vmax.f32 %v163, 0.0
    %v184 = vmax.f32 %v165, 0.0
    %v185 = vmax.f32 %v169, 0.0
    %v186 = vmax.f32 %v171, 0.0
    %v187 = vmax.f32 %v173, 0.0
    %v188 = vmax.f32 %v175, 0.0
    %v189 = vpack.c.bf16 %v183, %v181
    %v190 = vpack.c.bf16 %v184, %v182
    %v191 = vpack.c.bf16 %v187, %v185
    %v192 = vpack.c.bf16 %v188, %v186
    %v193 = vld [vmem:[%s5] sm:$0xff]
    %v194 = vld [vmem:[%s5 + $0x8] sm:$0xff]
    %v195 = vld [vmem:[%s5 + $0x10] sm:$0xff]
    %v196 = vld [vmem:[%s5 + $0x18] sm:$0xff]
    %198 = vset.pattern.permute.xlu0 0
    %199 = vperm.xlu0 %198, %v193
    %v200 = vpop.permute.xlu0 %199
    %203 = vset.pattern.permute.xlu0 0
    %204 = vperm.xlu0 %203, %v194
    %v205 = vpop.permute.xlu0 %204
    %208 = vset.pattern.permute.xlu0 0
    %209 = vperm.xlu0 %208, %v195
    %v210 = vpop.permute.xlu0 %209
    %213 = vset.pattern.permute.xlu0 0
    %214 = vperm.xlu0 %213, %v196
    %v215 = vpop.permute.xlu0 %214
    %v221 = vunpack.c.l.b16 %v177
    %v222 = vunpack.c.l.b16 %v178
    %v223 = vunpack.c.l.b16 %v179
    %v224 = vunpack.c.l.b16 %v180
    %v225 = vpack.c.b16 %v222, %v221
    %v226 = vpack.c.b16 %v224, %v223
    %vm227 = vcmask 261120
    %v229 = vsel %vm227, %v225, 0
    %v232 = vsel %vm227, %v226, 0
    %234 = vmatprep.subr.bf16.mxu0 %v190
    %235 = vmatpush1.bf16.msra.mxu0 %v189
    %236 = vmatprep.subr.bf16.mxu0 %v192
    %237 = vmatpush1.bf16.msra.mxu0 %v191
    %238 = vmatprep.subr.bf16.mxu0 0
    %239 = vmatpush1.bf16.msra.mxu0 0
    %240 = vmatprep.subr.bf16.mxu0 0
    %241 = vmatpush1.bf16.msra.mxu0 0
    %242 = vmatprep.subr.bf16.mxu0 0
    %243 = vmatpush1.bf16.msra.mxu0 0
    %244 = vmatprep.subr.bf16.mxu0 0
    %245 = vmatpush1.bf16.msra.mxu0 0
    %246 = vmatprep.subr.bf16.mxu0 0
    %247 = vmatpush1.bf16.msra.mxu0 0
    %248 = vmatprep.subr.bf16.mxu0 0
    %249 = vmatpush1.bf16.msra.mxu0 0
    %250 = vmatprep.subr.bf16.mxu0 0
    %251 = vmatpush1.bf16.msra.mxu0 0
    %252 = vmatprep.subr.bf16.mxu0 0
    %253 = vmatpush1.bf16.msra.mxu0 0
    %254 = vmatprep.subr.bf16.mxu0 0
    %255 = vmatpush1.bf16.msra.mxu0 0
    %256 = vmatprep.subr.bf16.mxu0 0
    %257 = vmatpush1.bf16.msra.mxu0 0
    %258 = vmatprep.subr.bf16.mxu0 0
    %259 = vmatpush1.bf16.msra.mxu0 0
    %260 = vmatprep.subr.bf16.mxu0 0
    %261 = vmatpush1.bf16.msra.mxu0 0
    %262 = vmatprep.subr.bf16.mxu0 0
    %263 = vmatpush1.bf16.msra.mxu0 0
    %264 = vmatprep.subr.bf16.mxu0 0
    %265 = vmatpush1.bf16.msra.mxu0 0
    %266 = vmatprep.mubr.bf16.mxu0 0
    %267 = vmatmul.mubr.bf16.gmra.mrb[0].mxu0 %v229
    %v268 = vpop.f32.mrb[0].mxu0
    %v269 = vadd.f32 %v200, %v268
    %v270 = vpop.f32.mrb[0].mxu0
    %v271 = vadd.f32 %v200, %v270
    %v272 = vpop.f32.mrb[0].mxu0
    %v273 = vadd.f32 %v205, %v272
    %v274 = vpop.f32.mrb[0].mxu0
    %v275 = vadd.f32 %v205, %v274
    %276 = vmatprep.mubr.bf16.mxu0 0
    %277 = vmatmul.mubr.bf16.gmra.mrb[0].mxu0 %v232
    %v278 = vpop.f32.mrb[0].mxu0
    %v279 = vadd.f32 %v210, %v278
    %v280 = vpop.f32.mrb[0].mxu0
    %v281 = vadd.f32 %v210, %v280
    %v282 = vpop.f32.mrb[0].mxu0
    %v283 = vadd.f32 %v215, %v282
    %v284 = vpop.f32.mrb[0].mxu0
    %v285 = vadd.f32 %v215, %v284
    %286 = vdwg.mxu0
    %v287 = vld [vmem:[%s6] sm:$0xf]
    %v288 = vld [vmem:[%s6 + $0x4] sm:$0xf]
    %v289 = vld [vmem:[%s6 + $0x8] sm:$0xf]
    %v290 = vld [vmem:[%s6 + $0xc] sm:$0xf]
    %v291 = vmax.f32 %v269, 0.0
    %v292 = vmax.f32 %v271, 0.0
    %v293 = vmax.f32 %v273, 0.0
    %v294 = vmax.f32 %v275, 0.0
    %v295 = vmax.f32 %v279, 0.0
    %v296 = vmax.f32 %v281, 0.0
    %v297 = vmax.f32 %v283, 0.0
    %v298 = vmax.f32 %v285, 0.0
    %v299 = vpack.c.bf16 %v293, %v291
    %v300 = vpack.c.bf16 %v294, %v292
    %v301 = vpack.c.bf16 %v297, %v295
    %v302 = vpack.c.bf16 %v298, %v296
    %v303 = vld [vmem:[%s7] sm:$0xff]
    %v304 = vld [vmem:[%s7 + $0x8] sm:$0xff]
    %v305 = vld [vmem:[%s7 + $0x10] sm:$0xff]
    %v306 = vld [vmem:[%s7 + $0x18] sm:$0xff]
    %308 = vset.pattern.permute.xlu0 0
    %309 = vperm.xlu0 %308, %v303
    %v310 = vpop.permute.xlu0 %309
    %313 = vset.pattern.permute.xlu0 0
    %314 = vperm.xlu0 %313, %v304
    %v315 = vpop.permute.xlu0 %314
    %318 = vset.pattern.permute.xlu0 0
    %319 = vperm.xlu0 %318, %v305
    %v320 = vpop.permute.xlu0 %319
    %323 = vset.pattern.permute.xlu0 0
    %324 = vperm.xlu0 %323, %v306
    %v325 = vpop.permute.xlu0 %324
    %v331 = vunpack.c.l.b16 %v287
    %v332 = vunpack.c.l.b16 %v288
    %v333 = vunpack.c.l.b16 %v289
    %v334 = vunpack.c.l.b16 %v290
    %v335 = vpack.c.b16 %v332, %v331
    %v336 = vpack.c.b16 %v334, %v333
    %v338 = vsel %vm227, %v335, 0
    %v341 = vsel %vm227, %v336, 0
    %343 = vmatprep.subr.bf16.mxu0 %v300
    %344 = vmatpush1.bf16.msra.mxu0 %v299
    %345 = vmatprep.subr.bf16.mxu0 %v302
    %346 = vmatpush1.bf16.msra.mxu0 %v301
    %347 = vmatprep.subr.bf16.mxu0 0
    %348 = vmatpush1.bf16.msra.mxu0 0
    %349 = vmatprep.subr.bf16.mxu0 0
    %350 = vmatpush1.bf16.msra.mxu0 0
    %351 = vmatprep.subr.bf16.mxu0 0
    %352 = vmatpush1.bf16.msra.mxu0 0
    %353 = vmatprep.subr.bf16.mxu0 0
    %354 = vmatpush1.bf16.msra.mxu0 0
    %355 = vmatprep.subr.bf16.mxu0 0
    %356 = vmatpush1.bf16.msra.mxu0 0
    %357 = vmatprep.subr.bf16.mxu0 0
    %358 = vmatpush1.bf16.msra.mxu0 0
    %359 = vmatprep.subr.bf16.mxu0 0
    %360 = vmatpush1.bf16.msra.mxu0 0
    %361 = vmatprep.subr.bf16.mxu0 0
    %362 = vmatpush1.bf16.msra.mxu0 0
    %363 = vmatprep.subr.bf16.mxu0 0
    %364 = vmatpush1.bf16.msra.mxu0 0
    %365 = vmatprep.subr.bf16.mxu0 0
    %366 = vmatpush1.bf16.msra.mxu0 0
    %367 = vmatprep.subr.bf16.mxu0 0
    %368 = vmatpush1.bf16.msra.mxu0 0
    %369 = vmatprep.subr.bf16.mxu0 0
    %370 = vmatpush1.bf16.msra.mxu0 0
    %371 = vmatprep.subr.bf16.mxu0 0
    %372 = vmatpush1.bf16.msra.mxu0 0
    %373 = vmatprep.subr.bf16.mxu0 0
    %374 = vmatpush1.bf16.msra.mxu0 0
    %375 = vmatprep.mubr.bf16.mxu0 0
    %376 = vmatmul.mubr.bf16.gmra.mrb[0].mxu0 %v338
    %v377 = vpop.f32.mrb[0].mxu0
    %v378 = vadd.f32 %v310, %v377
    %v379 = vpop.f32.mrb[0].mxu0
    %v380 = vadd.f32 %v310, %v379
    %v381 = vpop.f32.mrb[0].mxu0
    %v382 = vadd.f32 %v315, %v381
    %v383 = vpop.f32.mrb[0].mxu0
    %v384 = vadd.f32 %v315, %v383
    %385 = vmatprep.mubr.bf16.mxu0 0
    %386 = vmatmul.mubr.bf16.gmra.mrb[0].mxu0 %v341
    %v387 = vpop.f32.mrb[0].mxu0
    %v388 = vadd.f32 %v320, %v387
    %v389 = vpop.f32.mrb[0].mxu0
    %v390 = vadd.f32 %v320, %v389
    %v391 = vpop.f32.mrb[0].mxu0
    %v392 = vadd.f32 %v325, %v391
    %v393 = vpop.f32.mrb[0].mxu0
    %v394 = vadd.f32 %v325, %v393
    %395 = vdwg.mxu0
    %v396 = vld [vmem:[%s8] sm:$0x1]
    %v397 = vpack.c.bf16 %v382, %v378
    %v398 = vpack.c.bf16 %v384, %v380
    %v399 = vpack.c.bf16 %v392, %v388
    %v400 = vpack.c.bf16 %v394, %v390
    %v401 = vld [vmem:[#allocation2] sm:$0x1]
    %403 = vset.pattern.permute.xlu0 0
    %404 = vperm.xlu0 %403, %v401
    %v405 = vpop.permute.xlu0 %404
    %v407 = vlaneseq
    %v408 = vshrl.u32 %v407, 7
    %v409 = vsub.s32 0, %v408
    %v410 = vrot.slane %v405, %v409
    %v412 = vsel %vm227, %v396, 0
    %414 = vmatprep.subr.bf16.mxu0 %v398
    %415 = vmatpush1.bf16.msra.mxu0 %v397
    %416 = vmatprep.subr.bf16.mxu0 %v400
    %417 = vmatpush1.bf16.msra.mxu0 %v399
    %418 = vmatprep.subr.bf16.mxu0 0
    %419 = vmatpush1.bf16.msra.mxu0 0
    %420 = vmatprep.subr.bf16.mxu0 0
    %421 = vmatpush1.bf16.msra.mxu0 0
    %422 = vmatprep.subr.bf16.mxu0 0
    %423 = vmatpush1.bf16.msra.mxu0 0
    %424 = vmatprep.subr.bf16.mxu0 0
    %425 = vmatpush1.bf16.msra.mxu0 0
    %426 = vmatprep.subr.bf16.mxu0 0
    %427 = vmatpush1.bf16.msra.mxu0 0
    %428 = vmatprep.subr.bf16.mxu0 0
    %429 = vmatpush1.bf16.msra.mxu0 0
    %430 = vmatprep.subr.bf16.mxu0 0
    %431 = vmatpush1.bf16.msra.mxu0 0
    %432 = vmatprep.subr.bf16.mxu0 0
    %433 = vmatpush1.bf16.msra.mxu0 0
    %434 = vmatprep.subr.bf16.mxu0 0
    %435 = vmatpush1.bf16.msra.mxu0 0
    %436 = vmatprep.subr.bf16.mxu0 0
    %437 = vmatpush1.bf16.msra.mxu0 0
    %438 = vmatprep.subr.bf16.mxu0 0
    %439 = vmatpush1.bf16.msra.mxu0 0
    %440 = vmatprep.subr.bf16.mxu0 0
    %441 = vmatpush1.bf16.msra.mxu0 0
    %442 = vmatprep.subr.bf16.mxu0 0
    %443 = vmatpush1.bf16.msra.mxu0 0
    %444 = vmatprep.subr.bf16.mxu0 0
    %445 = vmatpush1.bf16.msra.mxu0 0
    %446 = vmatprep.mubr.bf16.mxu0 0
    %447 = vmatmul.mubr.bf16.gmra.mrb[0].mxu0 %v412
    %v448 = vpop.f32.mrb[0].mxu0
    %v449 = vadd.f32 %v410, %v448
    %v450 = vpop.f32.mrb[0].mxu0
    %v451 = vadd.f32 %v410, %v450
    %v452 = vpop.f32.mrb[0].mxu0
    %v453 = vpop.f32.mrb[0].mxu0
    %454 = vdwg.mxu0
    %v457 = vcombine.low %v449, %v451
    %v459 = vunpack.c.l.s4 1966171168
    %v460 = vunpack.c.0.s8 %v459
    %v461 = vlaneseq
    %v462 = vshrl.u32 %v461, 7
    %v463 = vsub.s32 %v460, %v462
    %v464 = vrot.slane %v457, %v463
    %v466 = vunpack.c.l.s4 1966171168
    %v467 = vunpack.c.0.s8 %v466
    %v468 = vlaneseq
    %v469 = vshrl.u32 %v468, 7
    %v470 = vsub.s32 %v467, %v469
    %v471 = vrot.slane %v464, %v470
    %v473 = vlaneseq
    %vm474 = vcmp.ge.s32.totalorder %v473, 0
    %vm475 = vcmp.lt.s32.totalorder %v473, 256
    %vm476 = vmand %vm474, %vm475
    %477 = vst.msk [vmem:[#allocation3] sm:$0x3] %vm476, %v471
    %v478 = vld [vmem:[%s1] sm:$0x3]
    %v479 = vmax.f32 %v449, 0.0
    %v480 = vmax.f32 %v451, 0.0
    %v482 = vlaneseq
    %v483 = vshrl.u32 %v482, 7
    %v484 = vsub.s32 0, %v483
    %v485 = vrot.slane %v478, %v484
    %v486 = vlaneseq
    %v487 = vshrl.u32 %v486, 7
    %v488 = vsub.s32 1, %v487
    %v489 = vrot.slane %v478, %v488
    %v492 = vmul.f32 %v449, %v485
    %v493 = vmul.f32 %v451, %v489
    %v494 = vsub.f32 %v479, %v492
    %v495 = vsub.f32 %v480, %v493
    %v496 = vand.u32 2147483647, %v449
    %v497 = vand.u32 2147483647, %v451
    %v498 = vsub.f32 0.0, %v496
    %v499 = vsub.f32 0.0, %v497
    %v500 = vmul.f32 %v498, 1.442695
    %v501 = vpow.pop %v500
    %v502 = vmul.f32 %v499, 1.442695
    %v503 = vpow.pop %v502
    %v504 = vadd.f32 %v501, 1.0
    %v505 = vlog2.pop %v504
    %v506 = vmul.f32 %v505, 0.6931472
    %v507 = vmul.f32 -0.5, %v501
    %v508 = vadd.f32 %v507, 1.0
    %v509 = vmul.f32 %v508, %v501
    %v510 = vand.u32 2147483647, %v501
    %vm511 = vcmp.lt.f32.partialorder %v510, 0.0004427343
    %v512 = vsel %vm511, %v509, %v506
    %v513 = vadd.f32 %v503, 1.0
    %v514 = vlog2.pop %v513
    %v515 = vmul.f32 %v514, 0.6931472
    %v516 = vmul.f32 -0.5, %v503
    %v517 = vadd.f32 %v516, 1.0
    %v518 = vmul.f32 %v517, %v503
    %v519 = vand.u32 2147483647, %v503
    %vm520 = vcmp.lt.f32.partialorder %v519, 0.0004427343
    %v521 = vsel %vm520, %v518, %v515
    %v522 = vadd.f32 %v494, %v512
    %v523 = vadd.f32 %v495, %v521
    %v524 = vlaneseq
    %v525 = vand.u32 %v524, 127
    %v526 = vadd.s32 %v525, 128
    %s527 = smul.u32 0, 256
    %v528 = vstv %s527
    %v529 = vadd.s32 %v528, %v525
    %v530 = vadd.s32 %v528, %v526
    %vm531 = vcmp.lt.s32.totalorder %v529, 256
    %vm532 = vcmp.lt.s32.totalorder %v530, 256
    %v533 = vsel %vm531, %v522, 0.0
    %v534 = vsel %vm532, %v523, 0.0
    %vm535 = vcmask 1040384
    %v536 = vsel %vm535, %v533, 0.0
    %v537 = vsel %vm535, %v534, 0.0
    %v538 = vadd.f32 %v536, %v537
    %539 = vadd.xlane.f32.xlu0 %v538
    %v540 = vpop.xlane.xlu0 %539
    %v541 = vrot.slane %v540, 4
    %v542 = vadd.f32 %v540, %v541
    %v543 = vrot.slane %v542, 2
    %v544 = vadd.f32 %v542, %v543
    %v545 = vrot.slane %v544, 1
    %v546 = vadd.f32 %v544, %v545
    %s547 = vtos %v546
    %v548 = vstv %s547
    %vm549 = vcmask 0
    %550 = vst.msk [vmem:[#allocation5] sm:$0x1] %vm549, %v548
    // Predicated region
    $region42: #{tpu_custom_call.1} parent=1 // pred_check
      _
    $region43: #{tpu_custom_call.1} parent=1 // pred_check_branch
      %552 = sbr.rel (0) target = $region45
    $region44: #{tpu_custom_call.1} parent=1 // pred_region
      %s554 = ssub.s32 32, 32
      %555 = vsyncadd [#allocation4], %s554
      %s557 = sshll.u32 [#allocation3], 4
      %s558 = int_to_ptr.vmem [resolvable:$true] %s557
      %560 = dma.vmem_to_hbm [thread:$0]  %s558, 32, %s10, [#allocation4]
    $region45: #{tpu_custom_call.1} parent=1 // pred_fallthru
      _
    // Predicated region
    $region46: #{tpu_custom_call.1} parent=1 // pred_check
      _
    $region47: #{tpu_custom_call.1} parent=1 // pred_check_branch
      %562 = sbr.rel (0) target = $region49
    $region48: #{tpu_custom_call.1} parent=1 // pred_region
      %s564 = ssub.s32 16, 16
      %565 = vsyncadd [#allocation6], %s564
      %s567 = sshll.u32 [#allocation5], 4
      %s568 = int_to_ptr.vmem [resolvable:$true] %s567
      %570 = dma.vmem_to_hbm [thread:$0]  %s568, 16, %s11, [#allocation6]
    $region49: #{tpu_custom_call.1} parent=1 // pred_fallthru
      _
    // Predicated region
    $region50: #{tpu_custom_call.1} parent=1 // pred_check
      _
    $region51: #{tpu_custom_call.1} parent=1 // pred_check_branch
      %572 = sbr.rel (0) target = $region53
    $region52: #{tpu_custom_call.1} parent=1 // pred_region
      %573 = dma.done [#allocation4], 32
    $region53: #{tpu_custom_call.1} parent=1 // pred_fallthru
      _
    // Predicated region
    $region54: #{tpu_custom_call.1} parent=1 // pred_check
      _
    $region55: #{tpu_custom_call.1} parent=1 // pred_check_branch
      %575 = sbr.rel (0) target = $region57
    $region56: #{tpu_custom_call.1} parent=1 // pred_region
      %576 = dma.done [#allocation6], 16
    $region57: #{tpu_custom_call.1} parent=1 // pred_fallthru
      _
    %577 = vsyncpa [#allocation4], 1
    %578 = vsyncpa [#allocation6], 1

</llo_original>
